<compile_context>
chip_gen: v7x
topology: tpu7x:2x2x1
jax: 0.10.0
libtpu: 0.0.40
codegen_flags: <defaults>
</compile_context>

<pallas_src>
import jax
import jax.numpy as jnp
from jax.experimental import pallas as pl
from jax.experimental.pallas import tpu as pltpu

_LANE = 128             # vreg lane width (fast axis)
_MAX_BLOCK_ROWS = 4096  # ~2 MiB/block for f32; 4x (in+out, double-buffered) = 8 MiB


# ----------------------------------------------------------------------------
# Primary kernel: zero-traffic aliased no-op (Identity really is a zero-op)
# ----------------------------------------------------------------------------
def _identity_alias_kernel(x_hbm_ref, o_hbm_ref):
    # The output HBM buffer is aliased to the input HBM buffer, so the result
    # is already in place.  Nothing to DMA, nothing to compute.
    del x_hbm_ref, o_hbm_ref


def _identity_noop(x):
    return pl.pallas_call(
        _identity_alias_kernel,
        out_shape=jax.ShapeDtypeStruct(x.shape, x.dtype),
        in_specs=[pl.BlockSpec(memory_space=pl.ANY)],
        out_specs=pl.BlockSpec(memory_space=pl.ANY),
        input_output_aliases={0: 0},
        cost_estimate=pl.CostEstimate(flops=0, transcendentals=0, bytes_accessed=0),
    )(x)


# ----------------------------------------------------------------------------
# Fallback kernel: lane-dense, double-buffered streaming copy
# ----------------------------------------------------------------------------
def _copy_kernel(x_ref, o_ref):
    o_ref[...] = x_ref[...]


def _sublane_align(dtype) -> int:
    # Sub-32-bit dtypes pack along sublanes: f32 -> 8, bf16 -> 16, int8 -> 32.
    itemsize = max(1, jnp.dtype(dtype).itemsize)
    return max(8, 32 // itemsize)


def _identity_copy(x):
    orig_shape = x.shape
    dtype = x.dtype
    n = x.size
    sub = _sublane_align(dtype)

    # Present the data as a lane-dense (rows, 128) slab; pad only if needed.
    flat = x.reshape(-1)
    rows = pl.cdiv(n, _LANE)
    rows_aligned = pl.cdiv(rows, sub) * sub
    padded_n = rows_aligned * _LANE
    if padded_n != n:
        flat = jnp.pad(flat, (0, padded_n - n))
    x2 = flat.reshape(rows_aligned, _LANE)

    # Large blocks amortize the ~0.35 us per-grid-step overhead while staying
    # well inside every generation's scoped-VMEM default.
    tr = min(rows_aligned, _MAX_BLOCK_ROWS)
    rows_padded = pl.cdiv(rows_aligned, tr) * tr
    if rows_padded != rows_aligned:
        x2 = jnp.pad(x2, ((0, rows_padded - rows_aligned), (0, 0)))

    itemsize = jnp.dtype(dtype).itemsize
    out = pl.pallas_call(
        _copy_kernel,
        out_shape=jax.ShapeDtypeStruct((rows_padded, _LANE), dtype),
        grid_spec=pltpu.PrefetchScalarGridSpec(
            num_scalar_prefetch=0,
            grid=(rows_padded // tr,),
            in_specs=[pl.BlockSpec((tr, _LANE), lambda i: (i, 0))],
            out_specs=pl.BlockSpec((tr, _LANE), lambda i: (i, 0)),
        ),
        compiler_params=pltpu.CompilerParams(
            dimension_semantics=("parallel",),  # megacore sharding on v7x
        ),
        cost_estimate=pl.CostEstimate(
            flops=0, transcendentals=0,
            bytes_accessed=2 * rows_padded * _LANE * itemsize),
    )(x2)

    if padded_n == n and rows_padded == rows_aligned:
        return out.reshape(orig_shape)
    return out.reshape(-1)[:n].reshape(orig_shape)


# ----------------------------------------------------------------------------
# Public wrapper
# ----------------------------------------------------------------------------
def identity_pallas(x, *, force_copy=False):
    """Identity forward: returns an array equal to `x` (same shape & dtype)."""
    if x.size == 0:
        return x
    if force_copy:
        return _identity_copy(x)
    return _identity_noop(x)


# ----------------------------------------------------------------------------
# Demo / self-check
# ----------------------------------------------------------------------------
if __name__ == "__main__":
    key = jax.random.PRNGKey(0)
    x = jax.random.normal(key, (2, 4, 16, 16), jnp.float32)

    fwd = jax.jit(identity_pallas)
    try:
        y = jax.block_until_ready(fwd(x))
    except Exception:
        # Robustness: if this Mosaic build rejects the empty-body aliased
        # form, fall back to the (still cheap, previously verified)
        # streaming-copy kernel.
        fwd = jax.jit(lambda a: identity_pallas(a, force_copy=True))
        y = jax.block_until_ready(fwd(x))

    assert y.shape == x.shape, (y.shape, x.shape)
    assert y.dtype == x.dtype, (y.dtype, x.dtype)
    # The demo input contains no NaNs, so exact equality is the right check.
    assert bool(jnp.array_equal(y, x))
    print("KERNEL_OK")
</pallas_src>

<mosaic_0001>
module attributes {stable_mosaic.version = 11 : i64} {
  func.func @_identity_alias_kernel(%arg0: memref<2x4x16x16xf32, #tpu.memory_space<any>>, %arg1: memref<2x4x16x16xf32, #tpu.memory_space<any>>) attributes {dimension_semantics = [], scalar_prefetch = 0 : i64, scratch_operands = 0 : i64, tpu.core_type = #tpu.core_type<tc>} {
    return
  }
}

module attributes {stable_mosaic.version = 11 : i64} {
  func.func @_copy_kernel(%arg0: i32, %arg1: memref<16x128xf32, #tpu.memory_space<vmem>>, %arg2: memref<16x128xf32, #tpu.memory_space<vmem>>) attributes {dimension_semantics = [#tpu.dimension_semantics<parallel>], iteration_bounds = array<i64: 1>, scalar_prefetch = 0 : i64, scratch_operands = 0 : i64, tpu.core_type = #tpu.core_type<tc>, window_params = [{transform_indices = @transform_0, window_bounds = array<i64: 16, 128>}, {transform_indices = @transform_1, window_bounds = array<i64: 16, 128>}]} {
    %c0 = arith.constant 0 : index
    %c0_0 = arith.constant 0 : index
    %0 = vector.load %arg1[%c0, %c0_0] : memref<16x128xf32, #tpu.memory_space<vmem>>, vector<16x128xf32>
    %c0_1 = arith.constant 0 : index
    %c0_2 = arith.constant 0 : index
    %1 = vector.load %arg2[%c0_1, %c0_2] : memref<16x128xf32, #tpu.memory_space<vmem>>, vector<16x128xf32>
    tpu.vector_store %arg2[%c0_1, %c0_2], %0 {strides = array<i32>} : memref<16x128xf32, #tpu.memory_space<vmem>>, vector<16x128xf32>,
    return
  }
  func.func @transform_0(%arg0: i32) -> (i32, i32) {
    %c0_i32 = arith.constant 0 : i32
    %c0_i32_0 = arith.constant 0 : i32
    return %arg0, %c0_i32 : i32, i32
  }
  func.func @transform_1(%arg0: i32) -> (i32, i32) {
    %c0_i32 = arith.constant 0 : i32
    %c0_i32_0 = arith.constant 0 : i32
    return %arg0, %c0_i32 : i32, i32
  }
}

</mosaic_0001>

<llo_original>
// kernel: identity_pallas.1
$region0: #{identity_pallas.1}
  #allocation0 [shape = 'u32[]', space=smem, size = 0x4, offset = 0x4, fixed_abs, tag = 'smem constant byte address 0x4 - core index']
  #allocation1 [shape = 'u32[144,128]{1,0:T(1,128)}', space=vmem, size = 0x12000, scoped, tag = 'internal scratch']
  %s0 = inlined_call_operand.hbm [shape: f32[2,4,16,16], index: 0, kind: input, shape index: {}, may-alias: {0,1}]
  %s1 = inlined_call_operand.hbm [shape: f32[2,4,16,16], index: 1, kind: output, shape index: {}, may-alias: {0,1}]
  %s2 = sld [smem:[#allocation0]]
  $region2: #{identity_pallas.1} parent=0
    _
  %s4 = ssub.s32 1, %s2
  %s5 = scalar_select 0, %s4, %s2

// kernel: _lambda_.1
$region0: #{_lambda_.1}
  #allocation0 [shape = 'u32[]', space=smem, size = 0x4, offset = 0x4, fixed_abs, tag = 'smem constant byte address 0x4 - core index']
  #allocation1 [shape = 'u32[144,128]{1,0:T(1,128)}', space=vmem, size = 0x12000, scoped, tag = 'internal scratch']
  %s0 = inlined_call_operand.vmem [shape: f32[16,128], index: 0, kind: input, shape index: {}]
  %s1 = inlined_call_operand.vmem [shape: f32[16,128], index: 1, kind: output, shape index: {}]
  %s2 = sld [smem:[#allocation0]]
  $region14: #{_lambda_.1} parent=0
    _
  %s4 = ssub.s32 1, %s2
  %s5 = scalar_select 0, %s4, %s2
  // Predicated region
  $region2: #{_lambda_.1} parent=0 // pred_check
    _
  $region3: #{_lambda_.1} parent=0 // pred_check_branch
    %7 = sbr.rel (0) target = $region5
  $region4: #{_lambda_.1} parent=0 // pred_region
    _
  $region5: #{_lambda_.1} parent=0 // pred_fallthru
    _
  %v8 = vld [vmem:[%s0] sm:$0xff]
  %v9 = vld [vmem:[%s0 + $0x8] sm:$0xff]
  %10 = vst [vmem:[%s1] sm:$0xff] %v8
  %11 = vst [vmem:[%s1 + $0x8] sm:$0xff] %v9
  // Predicated region
  $region6: #{_lambda_.1} parent=0 // pred_check
    _
  $region7: #{_lambda_.1} parent=0 // pred_check_branch
    %13 = sbr.rel (0) target = $region9
  $region8: #{_lambda_.1} parent=0 // pred_region
    _
  $region9: #{_lambda_.1} parent=0 // pred_fallthru
    _
  // Predicated region
  $region10: #{_lambda_.1} parent=0 // pred_check
    _
  $region11: #{_lambda_.1} parent=0 // pred_check_branch
    %15 = sbr.rel (0) target = $region13
  $region12: #{_lambda_.1} parent=0 // pred_region
    _
  $region13: #{_lambda_.1} parent=0 // pred_fallthru
    _

</llo_original>
